<compile_context>
chip_gen: v7x
topology: tpu7x:2x2x1
jax: 0.10.0
libtpu: 0.0.40
codegen_flags: <defaults>
</compile_context>

<pallas_src>
import jax
import jax.numpy as jnp
from jax.experimental import pallas as pl
from jax.experimental.pallas import tpu as pltpu

# TODO(synk): flip to False if the repo's MLP helper leaves its final Linear
# un-activated (the common convention); the pure-JAX reference below uses the
# same flag so the self-test stays consistent either way.
_ACT_ON_LAST_MLP_LAYER = True


def _mlp_block_kernel(x_ref, w1_ref, b_ref, w2_ref, wo_ref, bo_ref, y_ref):
    """Entire MLPBlock forward in one invocation (everything VMEM-resident).

    x_ref  : (B, H)            f32   input
    w1_ref : (n_blocks, H, H)  bf16  first-linear weights, all blocks
    b_ref  : (2*n_blocks, H)   f32   row 2i   = first-linear bias of block i
                                     row 2i+1 = second-linear bias of block i
    w2_ref : (n_blocks, H, H)  bf16  second-linear weights, all blocks
    wo_ref : (H, O)            bf16  output projection weight
    bo_ref : (1, O)            f32   output projection bias
    y_ref  : (B, O)            f32   output
    """
    n_blocks = w1_ref.shape[0]
    h = x_ref[...].astype(jnp.float32)            # carried hidden state, f32

    # Statically unrolled residual chain (n_blocks known at trace time).
    # bf16 operands into the MXU, f32 accumulate, f32 elementwise.
    for i in range(n_blocks):
        a = jnp.dot(h.astype(jnp.bfloat16), w1_ref[i],
                    preferred_element_type=jnp.float32)
        a = jnp.maximum(a + b_ref[2 * i: 2 * i + 1, :], 0.0)
        z = jnp.dot(a.astype(jnp.bfloat16), w2_ref[i],
                    preferred_element_type=jnp.float32)
        z = z + b_ref[2 * i + 1: 2 * i + 2, :]
        if _ACT_ON_LAST_MLP_LAYER:
            z = jnp.maximum(z, 0.0)
        h = z + h                                 # residual add (f32)

    y = jnp.dot(h.astype(jnp.bfloat16), wo_ref[...],
                preferred_element_type=jnp.float32) + bo_ref[...]
    y_ref[...] = y


def mlp_block_forward(x, w1, b, w2, wo, bo):
    """x: (B, H) f32.  w1/w2: (n_blocks, H, H) bf16.  b: (2*n_blocks, H) f32.
    wo: (H, O) bf16.  bo: (1, O) f32.  Returns (B, O) f32.

    Weights/biases are expected in their final layout+dtype (prepared once at
    parameter-init time, see init_params) — no per-call padding or cast HLOs.
    """
    B, H = x.shape
    n_blocks = w1.shape[0]
    O = wo.shape[1]

    def nbytes(a):
        return a.size * a.dtype.itemsize

    resident = sum(nbytes(a) for a in (x, w1, b, w2, wo, bo)) + B * O * 4

    # All block weights stay VMEM-resident for the whole call.
    # TODO(synk): if 2*n_blocks*H*H*2 bytes grows past ~40-48 MiB (v7x has only
    # 64 MiB physical VMEM), switch to a grid axis over n_blocks ("arbitrary")
    # that streams w1[i]/w2[i] via BlockSpec (Buffered(2)) with h carried in a
    # VMEM scratch accumulator; and for large serving batches add a leading
    # batch-tile grid axis marked "parallel" so v7x's two TensorCores both get
    # work (weights grid-invariant via index_map returning block 0).
    vmem_limit = int(min(64 * 1024 * 1024, max(8 * 1024 * 1024, 2 * resident)))

    cost = pl.CostEstimate(
        flops=2 * B * H * (2 * n_blocks * H + O),
        transcendentals=0,
        bytes_accessed=resident,
    )

    vmem = pl.BlockSpec(memory_space=pltpu.MemorySpace.VMEM)
    return pl.pallas_call(
        _mlp_block_kernel,
        out_shape=jax.ShapeDtypeStruct((B, O), jnp.float32),
        in_specs=[vmem] * 6,          # whole arrays, VMEM-resident, no grid
        out_specs=vmem,
        compiler_params=pltpu.CompilerParams(vmem_limit_bytes=vmem_limit),
        cost_estimate=cost,
    )(x, w1, b, w2, wo, bo)


def init_params(key, h_dim, out_dim, n_blocks, scale=0.1):
    """One-time parameter construction + kernel layout prep (not per-call)."""
    ks = jax.random.split(key, 6)
    f32 = jnp.float32
    w1 = scale * jax.random.normal(ks[0], (n_blocks, h_dim, h_dim), dtype=f32)
    b1 = scale * jax.random.normal(ks[1], (n_blocks, h_dim), dtype=f32)
    w2 = scale * jax.random.normal(ks[2], (n_blocks, h_dim, h_dim), dtype=f32)
    b2 = scale * jax.random.normal(ks[3], (n_blocks, h_dim), dtype=f32)
    wo = scale * jax.random.normal(ks[4], (h_dim, out_dim), dtype=f32)
    bo = scale * jax.random.normal(ks[5], (1, out_dim), dtype=f32)

    # Interleave the two per-block bias stacks into one densely packed array.
    b = jnp.zeros((2 * n_blocks, h_dim), f32).at[0::2].set(b1).at[1::2].set(b2)

    params = dict(
        w1=w1.astype(jnp.bfloat16),   # MXU operand dtype, fixed at init time
        b=b,                          # f32 (elementwise path stays f32)
        w2=w2.astype(jnp.bfloat16),
        wo=wo.astype(jnp.bfloat16),
        bo=bo,
    )
    return params


def _reference(x, params):
    """Pure-JAX reference with the same (bf16-rounded) weights, f32 math."""
    w1 = params["w1"].astype(jnp.float32)
    w2 = params["w2"].astype(jnp.float32)
    wo = params["wo"].astype(jnp.float32)
    b = params["b"]
    bo = params["bo"]
    h = x.astype(jnp.float32)
    for i in range(w1.shape[0]):
        a = jnp.maximum(h @ w1[i] + b[2 * i], 0.0)
        z = a @ w2[i] + b[2 * i + 1]
        if _ACT_ON_LAST_MLP_LAYER:
            z = jnp.maximum(z, 0.0)
        h = z + h
    return h @ wo + bo


if __name__ == "__main__":
    # Small shapes consistent with the module: batch=8, h_dim=32, out_dim=16,
    # n_blocks=3.
    B, H, O, n_blocks = 8, 32, 16, 3

    key = jax.random.PRNGKey(0)
    kx, kp = jax.random.split(key)
    x = jax.random.normal(kx, (B, H), dtype=jnp.float32)
    params = init_params(kp, H, O, n_blocks)

    fwd = jax.jit(mlp_block_forward)
    y = fwd(x, params["w1"], params["b"], params["w2"],
            params["wo"], params["bo"])
    y = jax.block_until_ready(y)

    y_ref = _reference(x, params)
    assert y.shape == (B, O)
    # bf16 matmul operands (f32 accumulate) -> loosened tolerance.
    assert jnp.allclose(y, y_ref, atol=2e-2, rtol=2e-2), "mismatch vs reference"

    print("KERNEL_OK")
</pallas_src>

<mosaic_0001>
module attributes {stable_mosaic.version = 11 : i64} {
  func.func @_mlp_block_kernel(%arg0: memref<8x32xf32, #tpu.memory_space<vmem>>, %arg1: memref<3x32x32xbf16, #tpu.memory_space<vmem>>, %arg2: memref<6x32xf32, #tpu.memory_space<vmem>>, %arg3: memref<3x32x32xbf16, #tpu.memory_space<vmem>>, %arg4: memref<32x16xbf16, #tpu.memory_space<vmem>>, %arg5: memref<1x16xf32, #tpu.memory_space<vmem>>, %arg6: memref<8x16xf32, #tpu.memory_space<vmem>>) attributes {dimension_semantics = [], scalar_prefetch = 0 : i64, scratch_operands = 0 : i64, tpu.core_type = #tpu.core_type<tc>} {
    %c0 = arith.constant 0 : index
    %c0_0 = arith.constant 0 : index
    %0 = vector.load %arg0[%c0, %c0_0] : memref<8x32xf32, #tpu.memory_space<vmem>>, vector<8x32xf32>
    %1 = arith.truncf %0 : vector<8x32xf32> to vector<8x32xbf16>
    %c0_1 = arith.constant 0 : index
    %c0_2 = arith.constant 0 : index
    %c0_3 = arith.constant 0 : index
    %2 = vector.load %arg1[%c0_1, %c0_2, %c0_3] : memref<3x32x32xbf16, #tpu.memory_space<vmem>>, vector<1x32x32xbf16>
    %3 = vector.shape_cast %2 : vector<1x32x32xbf16> to vector<32x32xbf16>
    %cst = arith.constant dense<0.000000e+00> : vector<8x32xf32>
    %4 = tpu.matmul %1, %3, %cst {dimension_numbers = #tpu.dot_dimension_numbers<[1], [0], [0], [1], [0, 0, 1, 1], [], []>} : vector<8x32xbf16>, vector<32x32xbf16>, vector<8x32xf32> -> vector<8x32xf32>
    %c0_4 = arith.constant 0 : index
    %c0_5 = arith.constant 0 : index
    %5 = vector.load %arg2[%c0_4, %c0_5] : memref<6x32xf32, #tpu.memory_space<vmem>>, vector<1x32xf32>
    %6 = vector.broadcast %5 : vector<1x32xf32> to vector<8x32xf32>
    %7 = arith.addf %4, %6 : vector<8x32xf32>
    %cst_6 = arith.constant 0.000000e+00 : f32
    %8 = vector.broadcast %cst_6 : f32 to vector<8x32xf32>
    %9 = arith.maximumf %7, %8 : vector<8x32xf32>
    %10 = arith.truncf %9 : vector<8x32xf32> to vector<8x32xbf16>
    %c0_7 = arith.constant 0 : index
    %c0_8 = arith.constant 0 : index
    %c0_9 = arith.constant 0 : index
    %11 = vector.load %arg3[%c0_7, %c0_8, %c0_9] : memref<3x32x32xbf16, #tpu.memory_space<vmem>>, vector<1x32x32xbf16>
    %12 = vector.shape_cast %11 : vector<1x32x32xbf16> to vector<32x32xbf16>
    %cst_10 = arith.constant dense<0.000000e+00> : vector<8x32xf32>
    %13 = tpu.matmul %10, %12, %cst_10 {dimension_numbers = #tpu.dot_dimension_numbers<[1], [0], [0], [1], [0, 0, 1, 1], [], []>} : vector<8x32xbf16>, vector<32x32xbf16>, vector<8x32xf32> -> vector<8x32xf32>
    %c1 = arith.constant 1 : index
    %c0_11 = arith.constant 0 : index
    %14 = vector.load %arg2[%c1, %c0_11] : memref<6x32xf32, #tpu.memory_space<vmem>>, vector<1x32xf32>
    %15 = vector.broadcast %14 : vector<1x32xf32> to vector<8x32xf32>
    %16 = arith.addf %13, %15 : vector<8x32xf32>
    %cst_12 = arith.constant 0.000000e+00 : f32
    %17 = vector.broadcast %cst_12 : f32 to vector<8x32xf32>
    %18 = arith.maximumf %16, %17 : vector<8x32xf32>
    %19 = arith.addf %18, %0 : vector<8x32xf32>
    %20 = arith.truncf %19 : vector<8x32xf32> to vector<8x32xbf16>
    %c1_13 = arith.constant 1 : index
    %c0_14 = arith.constant 0 : index
    %c0_15 = arith.constant 0 : index
    %21 = vector.load %arg1[%c1_13, %c0_14, %c0_15] : memref<3x32x32xbf16, #tpu.memory_space<vmem>>, vector<1x32x32xbf16>
    %22 = vector.shape_cast %21 : vector<1x32x32xbf16> to vector<32x32xbf16>
    %cst_16 = arith.constant dense<0.000000e+00> : vector<8x32xf32>
    %23 = tpu.matmul %20, %22, %cst_16 {dimension_numbers = #tpu.dot_dimension_numbers<[1], [0], [0], [1], [0, 0, 1, 1], [], []>} : vector<8x32xbf16>, vector<32x32xbf16>, vector<8x32xf32> -> vector<8x32xf32>
    %c2 = arith.constant 2 : index
    %c0_17 = arith.constant 0 : index
    %24 = vector.load %arg2[%c2, %c0_17] : memref<6x32xf32, #tpu.memory_space<vmem>>, vector<1x32xf32>
    %25 = vector.broadcast %24 : vector<1x32xf32> to vector<8x32xf32>
    %26 = arith.addf %23, %25 : vector<8x32xf32>
    %cst_18 = arith.constant 0.000000e+00 : f32
    %27 = vector.broadcast %cst_18 : f32 to vector<8x32xf32>
    %28 = arith.maximumf %26, %27 : vector<8x32xf32>
    %29 = arith.truncf %28 : vector<8x32xf32> to vector<8x32xbf16>
    %c1_19 = arith.constant 1 : index
    %c0_20 = arith.constant 0 : index
    %c0_21 = arith.constant 0 : index
    %30 = vector.load %arg3[%c1_19, %c0_20, %c0_21] : memref<3x32x32xbf16, #tpu.memory_space<vmem>>, vector<1x32x32xbf16>
    %31 = vector.shape_cast %30 : vector<1x32x32xbf16> to vector<32x32xbf16>
    %cst_22 = arith.constant dense<0.000000e+00> : vector<8x32xf32>
    %32 = tpu.matmul %29, %31, %cst_22 {dimension_numbers = #tpu.dot_dimension_numbers<[1], [0], [0], [1], [0, 0, 1, 1], [], []>} : vector<8x32xbf16>, vector<32x32xbf16>, vector<8x32xf32> -> vector<8x32xf32>
    %c3 = arith.constant 3 : index
    %c0_23 = arith.constant 0 : index
    %33 = vector.load %arg2[%c3, %c0_23] : memref<6x32xf32, #tpu.memory_space<vmem>>, vector<1x32xf32>
    %34 = vector.broadcast %33 : vector<1x32xf32> to vector<8x32xf32>
    %35 = arith.addf %32, %34 : vector<8x32xf32>
    %cst_24 = arith.constant 0.000000e+00 : f32
    %36 = vector.broadcast %cst_24 : f32 to vector<8x32xf32>
    %37 = arith.maximumf %35, %36 : vector<8x32xf32>
    %38 = arith.addf %37, %19 : vector<8x32xf32>
    %39 = arith.truncf %38 : vector<8x32xf32> to vector<8x32xbf16>
    %c2_25 = arith.constant 2 : index
    %c0_26 = arith.constant 0 : index
    %c0_27 = arith.constant 0 : index
    %40 = vector.load %arg1[%c2_25, %c0_26, %c0_27] : memref<3x32x32xbf16, #tpu.memory_space<vmem>>, vector<1x32x32xbf16>
    %41 = vector.shape_cast %40 : vector<1x32x32xbf16> to vector<32x32xbf16>
    %cst_28 = arith.constant dense<0.000000e+00> : vector<8x32xf32>
    %42 = tpu.matmul %39, %41, %cst_28 {dimension_numbers = #tpu.dot_dimension_numbers<[1], [0], [0], [1], [0, 0, 1, 1], [], []>} : vector<8x32xbf16>, vector<32x32xbf16>, vector<8x32xf32> -> vector<8x32xf32>
    %c4 = arith.constant 4 : index
    %c0_29 = arith.constant 0 : index
    %43 = vector.load %arg2[%c4, %c0_29] : memref<6x32xf32, #tpu.memory_space<vmem>>, vector<1x32xf32>
    %44 = vector.broadcast %43 : vector<1x32xf32> to vector<8x32xf32>
    %45 = arith.addf %42, %44 : vector<8x32xf32>
    %cst_30 = arith.constant 0.000000e+00 : f32
    %46 = vector.broadcast %cst_30 : f32 to vector<8x32xf32>
    %47 = arith.maximumf %45, %46 : vector<8x32xf32>
    %48 = arith.truncf %47 : vector<8x32xf32> to vector<8x32xbf16>
    %c2_31 = arith.constant 2 : index
    %c0_32 = arith.constant 0 : index
    %c0_33 = arith.constant 0 : index
    %49 = vector.load %arg3[%c2_31, %c0_32, %c0_33] : memref<3x32x32xbf16, #tpu.memory_space<vmem>>, vector<1x32x32xbf16>
    %50 = vector.shape_cast %49 : vector<1x32x32xbf16> to vector<32x32xbf16>
    %cst_34 = arith.constant dense<0.000000e+00> : vector<8x32xf32>
    %51 = tpu.matmul %48, %50, %cst_34 {dimension_numbers = #tpu.dot_dimension_numbers<[1], [0], [0], [1], [0, 0, 1, 1], [], []>} : vector<8x32xbf16>, vector<32x32xbf16>, vector<8x32xf32> -> vector<8x32xf32>
    %c5 = arith.constant 5 : index
    %c0_35 = arith.constant 0 : index
    %52 = vector.load %arg2[%c5, %c0_35] : memref<6x32xf32, #tpu.memory_space<vmem>>, vector<1x32xf32>
    %53 = vector.broadcast %52 : vector<1x32xf32> to vector<8x32xf32>
    %54 = arith.addf %51, %53 : vector<8x32xf32>
    %cst_36 = arith.constant 0.000000e+00 : f32
    %55 = vector.broadcast %cst_36 : f32 to vector<8x32xf32>
    %56 = arith.maximumf %54, %55 : vector<8x32xf32>
    %57 = arith.addf %56, %38 : vector<8x32xf32>
    %58 = arith.truncf %57 : vector<8x32xf32> to vector<8x32xbf16>
    %c0_37 = arith.constant 0 : index
    %c0_38 = arith.constant 0 : index
    %59 = vector.load %arg4[%c0_37, %c0_38] : memref<32x16xbf16, #tpu.memory_space<vmem>>, vector<32x16xbf16>
    %cst_39 = arith.constant dense<0.000000e+00> : vector<8x16xf32>
    %60 = tpu.matmul %58, %59, %cst_39 {dimension_numbers = #tpu.dot_dimension_numbers<[1], [0], [0], [1], [0, 0, 1, 1], [], []>} : vector<8x32xbf16>, vector<32x16xbf16>, vector<8x16xf32> -> vector<8x16xf32>
    %c0_40 = arith.constant 0 : index
    %c0_41 = arith.constant 0 : index
    %61 = vector.load %arg5[%c0_40, %c0_41] : memref<1x16xf32, #tpu.memory_space<vmem>>, vector<1x16xf32>
    %62 = vector.broadcast %61 : vector<1x16xf32> to vector<8x16xf32>
    %63 = arith.addf %60, %62 : vector<8x16xf32>
    %c0_42 = arith.constant 0 : index
    %c0_43 = arith.constant 0 : index
    %64 = vector.load %arg6[%c0_42, %c0_43] : memref<8x16xf32, #tpu.memory_space<vmem>>, vector<8x16xf32>
    tpu.vector_store %arg6[%c0_42, %c0_43], %63 {strides = array<i32>} : memref<8x16xf32, #tpu.memory_space<vmem>>, vector<8x16xf32>,
    return
  }
}

</mosaic_0001>

<llo_original>
// kernel: mlp_block_forward.1
$region0: #{mlp_block_forward.1}
  #allocation0 [shape = 'u32[]', space=smem, size = 0x4, offset = 0x4, fixed_abs, tag = 'smem constant byte address 0x4 - core index']
  #allocation1 [shape = 'u32[144,128]{1,0:T(1,128)}', space=vmem, size = 0x12000, scoped, tag = 'internal scratch']
  %s0 = inlined_call_operand.vmem [shape: f32[8,32], index: 0, kind: input, shape index: {}]
  %s1 = inlined_call_operand.hbm [shape: bf16[3,32,32], index: 1, kind: input, shape index: {}]
  %s2 = inlined_call_operand.vmem [shape: f32[6,32], index: 2, kind: input, shape index: {}]
  %s3 = inlined_call_operand.hbm [shape: bf16[3,32,32], index: 3, kind: input, shape index: {}]
  %s4 = inlined_call_operand.vmem [shape: bf16[32,16], index: 4, kind: input, shape index: {}]
  %s5 = inlined_call_operand.vmem [shape: f32[1,16], index: 5, kind: input, shape index: {}]
  %s6 = inlined_call_operand.hbm [shape: f32[8,16], index: 6, kind: output, shape index: {}]
  %s7 = sld [smem:[#allocation0]]
  $region42: #{mlp_block_forward.1} parent=0
    _
  %s9 = ssub.s32 1, %s7
  %s10 = scalar_select 0, %s9, %s7
  $region1: #{mlp_block_forward.1} parent=0
    #allocation2 [shape = 'u8[24576]{0}', space=vmem, size = 0x6000, scoped, tag = 'input window, operand 1, single buffered']
    #allocation3 [shape = 's32[1]{0}', space=sflag, size = 0x4, scoped, tag = 'scoped memory for mlp_block_forward.1']
    #allocation4 [shape = 's32[1]{0}', space=sflag, size = 0x4, scoped, tag = 'scoped memory for mlp_block_forward.1']
    #allocation5 [shape = 'u8[24576]{0}', space=vmem, size = 0x6000, scoped, tag = 'input window, operand 3, single buffered']
    #allocation6 [shape = 's32[1]{0}', space=sflag, size = 0x4, scoped, tag = 'scoped memory for mlp_block_forward.1']
    #allocation7 [shape = 'u8[4096]{0}', space=vmem, size = 0x1000, scoped, tag = 'output window, operand 0, single buffered']
    %11 = vsyncpa [#allocation3], 0
    %12 = vsyncpa [#allocation6], 0
    %13 = vsyncpa [#allocation4], 0
    // Predicated region
    $region2: #{mlp_block_forward.1} parent=1 // pred_check
      _
    $region3: #{mlp_block_forward.1} parent=1 // pred_check_branch
      %15 = sbr.rel (0) target = $region5
    $region4: #{mlp_block_forward.1} parent=1 // pred_region
      _
    $region5: #{mlp_block_forward.1} parent=1 // pred_fallthru
      _
    // Predicated region
    $region6: #{mlp_block_forward.1} parent=1 // pred_check
      _
    $region7: #{mlp_block_forward.1} parent=1 // pred_check_branch
      %17 = sbr.rel (0) target = $region9
    $region8: #{mlp_block_forward.1} parent=1 // pred_region
      %s19 = ssub.s32 768, 768
      %20 = vsyncadd [#allocation3], %s19
      %s21 = sshll.u32 [#allocation2], 4
      %s22 = int_to_ptr.vmem [resolvable:$true] %s21
      %27 = dma.hbm_to_vmem [thread:$0]  %s1, 768, %s22, [#allocation3], 64, 64, 4
    $region9: #{mlp_block_forward.1} parent=1 // pred_fallthru
      _
    // Predicated region
    $region10: #{mlp_block_forward.1} parent=1 // pred_check
      _
    $region11: #{mlp_block_forward.1} parent=1 // pred_check_branch
      %29 = sbr.rel (0) target = $region13
    $region12: #{mlp_block_forward.1} parent=1 // pred_region
      _
    $region13: #{mlp_block_forward.1} parent=1 // pred_fallthru
      _
    // Predicated region
    $region14: #{mlp_block_forward.1} parent=1 // pred_check
      _
    $region15: #{mlp_block_forward.1} parent=1 // pred_check_branch
      %31 = sbr.rel (0) target = $region17
    $region16: #{mlp_block_forward.1} parent=1 // pred_region
      %s33 = ssub.s32 768, 768
      %34 = vsyncadd [#allocation6], %s33
      %s35 = sshll.u32 [#allocation5], 4
      %s36 = int_to_ptr.vmem [resolvable:$true] %s35
      %41 = dma.hbm_to_vmem [thread:$0]  %s3, 768, %s36, [#allocation6], 64, 64, 4
    $region17: #{mlp_block_forward.1} parent=1 // pred_fallthru
      _
    // Predicated region
    $region18: #{mlp_block_forward.1} parent=1 // pred_check
      _
    $region19: #{mlp_block_forward.1} parent=1 // pred_check_branch
      %43 = sbr.rel (0) target = $region21
    $region20: #{mlp_block_forward.1} parent=1 // pred_region
      _
    $region21: #{mlp_block_forward.1} parent=1 // pred_fallthru
      _
    // Predicated region
    $region22: #{mlp_block_forward.1} parent=1 // pred_check
      _
    $region23: #{mlp_block_forward.1} parent=1 // pred_check_branch
      %45 = sbr.rel (0) target = $region25
    $region24: #{mlp_block_forward.1} parent=1 // pred_region
      _
    $region25: #{mlp_block_forward.1} parent=1 // pred_fallthru
      _
    // Predicated region
    $region26: #{mlp_block_forward.1} parent=1 // pred_check
      _
    $region27: #{mlp_block_forward.1} parent=1 // pred_check_branch
      %47 = sbr.rel (0) target = $region29
    $region28: #{mlp_block_forward.1} parent=1 // pred_region
      %48 = dma.done [#allocation3], 768
    $region29: #{mlp_block_forward.1} parent=1 // pred_fallthru
      _
    // Predicated region
    $region30: #{mlp_block_forward.1} parent=1 // pred_check
      _
    $region31: #{mlp_block_forward.1} parent=1 // pred_check_branch
      %50 = sbr.rel (0) target = $region33
    $region32: #{mlp_block_forward.1} parent=1 // pred_region
      %51 = dma.done [#allocation6], 768
    $region33: #{mlp_block_forward.1} parent=1 // pred_fallthru
      _
    %v53 = vld [vmem:[%s0] sm:$0xff]
    %v54 = vpack.c.bf16 %v53, %v53
    %v55 = vld [vmem:[#allocation2] sm:$0xf]
    %v56 = vld [vmem:[#allocation2 + $0x4] sm:$0xf]
    %v57 = vld [vmem:[#allocation2 + $0x8] sm:$0xf]
    %v58 = vld [vmem:[#allocation2 + $0xc] sm:$0xf]
    %v59 = vld [vmem:[%s2] sm:$0x1]
    %v60 = vlaneseq
    %v61 = vshrl.u32 %v60, 7
    %v62 = vsub.s32 0, %v61
    %v63 = vrot.slane %v59, %v62
    %v68 = vunpack.c.l.b16 %v55
    %v69 = vunpack.c.l.b16 %v56
    %v70 = vunpack.c.l.b16 %v57
    %v71 = vunpack.c.l.b16 %v58
    %v72 = vpack.c.b16 %v69, %v68
    %v73 = vpack.c.b16 %v71, %v70
    %vm76 = vcmask 261120
    %v78 = vsel %vm76, %v54, 0
    %80 = vmatprep.subr.bf16.mxu0 0
    %81 = vmatpush1.bf16.msra.mxu0 %v72
    %82 = vmatprep.subr.bf16.mxu0 0
    %83 = vmatpush1.bf16.msra.mxu0 %v73
    %84 = vmatprep.subr.bf16.mxu0 0
    %85 = vmatpush1.bf16.msra.mxu0 0
    %86 = vmatprep.subr.bf16.mxu0 0
    %87 = vmatpush1.bf16.msra.mxu0 0
    %88 = vmatprep.subr.bf16.mxu0 0
    %89 = vmatpush1.bf16.msra.mxu0 0
    %90 = vmatprep.subr.bf16.mxu0 0
    %91 = vmatpush1.bf16.msra.mxu0 0
    %92 = vmatprep.subr.bf16.mxu0 0
    %93 = vmatpush1.bf16.msra.mxu0 0
    %94 = vmatprep.subr.bf16.mxu0 0
    %95 = vmatpush1.bf16.msra.mxu0 0
    %96 = vmatprep.subr.bf16.mxu0 0
    %97 = vmatpush1.bf16.msra.mxu0 0
    %98 = vmatprep.subr.bf16.mxu0 0
    %99 = vmatpush1.bf16.msra.mxu0 0
    %100 = vmatprep.subr.bf16.mxu0 0
    %101 = vmatpush1.bf16.msra.mxu0 0
    %102 = vmatprep.subr.bf16.mxu0 0
    %103 = vmatpush1.bf16.msra.mxu0 0
    %104 = vmatprep.subr.bf16.mxu0 0
    %105 = vmatpush1.bf16.msra.mxu0 0
    %106 = vmatprep.subr.bf16.mxu0 0
    %107 = vmatpush1.bf16.msra.mxu0 0
    %108 = vmatprep.subr.bf16.mxu0 0
    %109 = vmatpush1.bf16.msra.mxu0 0
    %110 = vmatprep.subr.bf16.mxu0 0
    %111 = vmatpush1.bf16.msra.mxu0 0
    %112 = vmatprep.mubr.bf16.mxu0 0
    %113 = vmatmul.mubr.bf16.gmra.mrb[0].mxu0 %v78
    %v114 = vpop.f32.mrb[0].mxu0
    %v115 = vadd.f32 %v63, %v114
    %v116 = vpop.f32.mrb[0].mxu0
    %v117 = vpop.f32.mrb[0].mxu0
    %v118 = vpop.f32.mrb[0].mxu0
    %119 = vdwg.mxu0
    %v120 = vmax.f32 %v115, 0.0
    %v121 = vpack.c.bf16 %v120, %v120
    %v122 = vld [vmem:[#allocation5] sm:$0xf]
    %v123 = vld [vmem:[#allocation5 + $0x4] sm:$0xf]
    %v124 = vld [vmem:[#allocation5 + $0x8] sm:$0xf]
    %v125 = vld [vmem:[#allocation5 + $0xc] sm:$0xf]
    %v126 = vld [vmem:[%s2 + $0x1] sm:$0x1]
    %v127 = vlaneseq
    %v128 = vshrl.u32 %v127, 7
    %v129 = vsub.s32 0, %v128
    %v130 = vrot.slane %v126, %v129
    %v135 = vunpack.c.l.b16 %v122
    %v136 = vunpack.c.l.b16 %v123
    %v137 = vunpack.c.l.b16 %v124
    %v138 = vunpack.c.l.b16 %v125
    %v139 = vpack.c.b16 %v136, %v135
    %v140 = vpack.c.b16 %v138, %v137
    %v144 = vsel %vm76, %v121, 0
    %146 = vmatprep.subr.bf16.mxu0 0
    %147 = vmatpush1.bf16.msra.mxu0 %v139
    %148 = vmatprep.subr.bf16.mxu0 0
    %149 = vmatpush1.bf16.msra.mxu0 %v140
    %150 = vmatprep.subr.bf16.mxu0 0
    %151 = vmatpush1.bf16.msra.mxu0 0
    %152 = vmatprep.subr.bf16.mxu0 0
    %153 = vmatpush1.bf16.msra.mxu0 0
    %154 = vmatprep.subr.bf16.mxu0 0
    %155 = vmatpush1.bf16.msra.mxu0 0
    %156 = vmatprep.subr.bf16.mxu0 0
    %157 = vmatpush1.bf16.msra.mxu0 0
    %158 = vmatprep.subr.bf16.mxu0 0
    %159 = vmatpush1.bf16.msra.mxu0 0
    %160 = vmatprep.subr.bf16.mxu0 0
    %161 = vmatpush1.bf16.msra.mxu0 0
    %162 = vmatprep.subr.bf16.mxu0 0
    %163 = vmatpush1.bf16.msra.mxu0 0
    %164 = vmatprep.subr.bf16.mxu0 0
    %165 = vmatpush1.bf16.msra.mxu0 0
    %166 = vmatprep.subr.bf16.mxu0 0
    %167 = vmatpush1.bf16.msra.mxu0 0
    %168 = vmatprep.subr.bf16.mxu0 0
    %169 = vmatpush1.bf16.msra.mxu0 0
    %170 = vmatprep.subr.bf16.mxu0 0
    %171 = vmatpush1.bf16.msra.mxu0 0
    %172 = vmatprep.subr.bf16.mxu0 0
    %173 = vmatpush1.bf16.msra.mxu0 0
    %174 = vmatprep.subr.bf16.mxu0 0
    %175 = vmatpush1.bf16.msra.mxu0 0
    %176 = vmatprep.subr.bf16.mxu0 0
    %177 = vmatpush1.bf16.msra.mxu0 0
    %178 = vmatprep.mubr.bf16.mxu0 0
    %179 = vmatmul.mubr.bf16.gmra.mrb[0].mxu0 %v144
    %v180 = vpop.f32.mrb[0].mxu0
    %v181 = vadd.f32 %v130, %v180
    %v182 = vpop.f32.mrb[0].mxu0
    %v183 = vpop.f32.mrb[0].mxu0
    %v184 = vpop.f32.mrb[0].mxu0
    %185 = vdwg.mxu0
    %v186 = vmax.f32 %v181, 0.0
    %v187 = vadd.f32 %v186, %v53
    %v188 = vpack.c.bf16 %v187, %v187
    %s189 = scalar_lea.vmem [#allocation2], 16
    %v190 = vld [vmem:[%s189] sm:$0xf]
    %v191 = vld [vmem:[%s189 + $0x4] sm:$0xf]
    %v192 = vld [vmem:[%s189 + $0x8] sm:$0xf]
    %v193 = vld [vmem:[%s189 + $0xc] sm:$0xf]
    %v194 = vld [vmem:[%s2 + $0x2] sm:$0x1]
    %v195 = vlaneseq
    %v196 = vshrl.u32 %v195, 7
    %v197 = vsub.s32 0, %v196
    %v198 = vrot.slane %v194, %v197
    %v203 = vunpack.c.l.b16 %v190
    %v204 = vunpack.c.l.b16 %v191
    %v205 = vunpack.c.l.b16 %v192
    %v206 = vunpack.c.l.b16 %v193
    %v207 = vpack.c.b16 %v204, %v203
    %v208 = vpack.c.b16 %v206, %v205
    %v212 = vsel %vm76, %v188, 0
    %214 = vmatprep.subr.bf16.mxu0 0
    %215 = vmatpush1.bf16.msra.mxu0 %v207
    %216 = vmatprep.subr.bf16.mxu0 0
    %217 = vmatpush1.bf16.msra.mxu0 %v208
    %218 = vmatprep.subr.bf16.mxu0 0
    %219 = vmatpush1.bf16.msra.mxu0 0
    %220 = vmatprep.subr.bf16.mxu0 0
    %221 = vmatpush1.bf16.msra.mxu0 0
    %222 = vmatprep.subr.bf16.mxu0 0
    %223 = vmatpush1.bf16.msra.mxu0 0
    %224 = vmatprep.subr.bf16.mxu0 0
    %225 = vmatpush1.bf16.msra.mxu0 0
    %226 = vmatprep.subr.bf16.mxu0 0
    %227 = vmatpush1.bf16.msra.mxu0 0
    %228 = vmatprep.subr.bf16.mxu0 0
    %229 = vmatpush1.bf16.msra.mxu0 0
    %230 = vmatprep.subr.bf16.mxu0 0
    %231 = vmatpush1.bf16.msra.mxu0 0
    %232 = vmatprep.subr.bf16.mxu0 0
    %233 = vmatpush1.bf16.msra.mxu0 0
    %234 = vmatprep.subr.bf16.mxu0 0
    %235 = vmatpush1.bf16.msra.mxu0 0
    %236 = vmatprep.subr.bf16.mxu0 0
    %237 = vmatpush1.bf16.msra.mxu0 0
    %238 = vmatprep.subr.bf16.mxu0 0
    %239 = vmatpush1.bf16.msra.mxu0 0
    %240 = vmatprep.subr.bf16.mxu0 0
    %241 = vmatpush1.bf16.msra.mxu0 0
    %242 = vmatprep.subr.bf16.mxu0 0
    %243 = vmatpush1.bf16.msra.mxu0 0
    %244 = vmatprep.subr.bf16.mxu0 0
    %245 = vmatpush1.bf16.msra.mxu0 0
    %246 = vmatprep.mubr.bf16.mxu0 0
    %247 = vmatmul.mubr.bf16.gmra.mrb[0].mxu0 %v212
    %v248 = vpop.f32.mrb[0].mxu0
    %v249 = vadd.f32 %v198, %v248
    %v250 = vpop.f32.mrb[0].mxu0
    %v251 = vpop.f32.mrb[0].mxu0
    %v252 = vpop.f32.mrb[0].mxu0
    %253 = vdwg.mxu0
    %v254 = vmax.f32 %v249, 0.0
    %v255 = vpack.c.bf16 %v254, %v254
    %s256 = scalar_lea.vmem [#allocation5], 16
    %v257 = vld [vmem:[%s256] sm:$0xf]
    %v258 = vld [vmem:[%s256 + $0x4] sm:$0xf]
    %v259 = vld [vmem:[%s256 + $0x8] sm:$0xf]
    %v260 = vld [vmem:[%s256 + $0xc] sm:$0xf]
    %v261 = vld [vmem:[%s2 + $0x3] sm:$0x1]
    %v262 = vlaneseq
    %v263 = vshrl.u32 %v262, 7
    %v264 = vsub.s32 0, %v263
    %v265 = vrot.slane %v261, %v264
    %v270 = vunpack.c.l.b16 %v257
    %v271 = vunpack.c.l.b16 %v258
    %v272 = vunpack.c.l.b16 %v259
    %v273 = vunpack.c.l.b16 %v260
    %v274 = vpack.c.b16 %v271, %v270
    %v275 = vpack.c.b16 %v273, %v272
    %v279 = vsel %vm76, %v255, 0
    %281 = vmatprep.subr.bf16.mxu0 0
    %282 = vmatpush1.bf16.msra.mxu0 %v274
    %283 = vmatprep.subr.bf16.mxu0 0
    %284 = vmatpush1.bf16.msra.mxu0 %v275
    %285 = vmatprep.subr.bf16.mxu0 0
    %286 = vmatpush1.bf16.msra.mxu0 0
    %287 = vmatprep.subr.bf16.mxu0 0
    %288 = vmatpush1.bf16.msra.mxu0 0
    %289 = vmatprep.subr.bf16.mxu0 0
    %290 = vmatpush1.bf16.msra.mxu0 0
    %291 = vmatprep.subr.bf16.mxu0 0
    %292 = vmatpush1.bf16.msra.mxu0 0
    %293 = vmatprep.subr.bf16.mxu0 0
    %294 = vmatpush1.bf16.msra.mxu0 0
    %295 = vmatprep.subr.bf16.mxu0 0
    %296 = vmatpush1.bf16.msra.mxu0 0
    %297 = vmatprep.subr.bf16.mxu0 0
    %298 = vmatpush1.bf16.msra.mxu0 0
    %299 = vmatprep.subr.bf16.mxu0 0
    %300 = vmatpush1.bf16.msra.mxu0 0
    %301 = vmatprep.subr.bf16.mxu0 0
    %302 = vmatpush1.bf16.msra.mxu0 0
    %303 = vmatprep.subr.bf16.mxu0 0
    %304 = vmatpush1.bf16.msra.mxu0 0
    %305 = vmatprep.subr.bf16.mxu0 0
    %306 = vmatpush1.bf16.msra.mxu0 0
    %307 = vmatprep.subr.bf16.mxu0 0
    %308 = vmatpush1.bf16.msra.mxu0 0
    %309 = vmatprep.subr.bf16.mxu0 0
    %310 = vmatpush1.bf16.msra.mxu0 0
    %311 = vmatprep.subr.bf16.mxu0 0
    %312 = vmatpush1.bf16.msra.mxu0 0
    %313 = vmatprep.mubr.bf16.mxu0 0
    %314 = vmatmul.mubr.bf16.gmra.mrb[0].mxu0 %v279
    %v315 = vpop.f32.mrb[0].mxu0
    %v316 = vadd.f32 %v265, %v315
    %v317 = vpop.f32.mrb[0].mxu0
    %v318 = vpop.f32.mrb[0].mxu0
    %v319 = vpop.f32.mrb[0].mxu0
    %320 = vdwg.mxu0
    %v321 = vmax.f32 %v316, 0.0
    %v322 = vadd.f32 %v321, %v187
    %v323 = vpack.c.bf16 %v322, %v322
    %s324 = scalar_lea.vmem [#allocation2], 32
    %v325 = vld [vmem:[%s324] sm:$0xf]
    %v326 = vld [vmem:[%s324 + $0x4] sm:$0xf]
    %v327 = vld [vmem:[%s324 + $0x8] sm:$0xf]
    %v328 = vld [vmem:[%s324 + $0xc] sm:$0xf]
    %v329 = vld [vmem:[%s2 + $0x4] sm:$0x1]
    %v330 = vlaneseq
    %v331 = vshrl.u32 %v330, 7
    %v332 = vsub.s32 0, %v331
    %v333 = vrot.slane %v329, %v332
    %v338 = vunpack.c.l.b16 %v325
    %v339 = vunpack.c.l.b16 %v326
    %v340 = vunpack.c.l.b16 %v327
    %v341 = vunpack.c.l.b16 %v328
    %v342 = vpack.c.b16 %v339, %v338
    %v343 = vpack.c.b16 %v341, %v340
    %v347 = vsel %vm76, %v323, 0
    %349 = vmatprep.subr.bf16.mxu0 0
    %350 = vmatpush1.bf16.msra.mxu0 %v342
    %351 = vmatprep.subr.bf16.mxu0 0
    %352 = vmatpush1.bf16.msra.mxu0 %v343
    %353 = vmatprep.subr.bf16.mxu0 0
    %354 = vmatpush1.bf16.msra.mxu0 0
    %355 = vmatprep.subr.bf16.mxu0 0
    %356 = vmatpush1.bf16.msra.mxu0 0
    %357 = vmatprep.subr.bf16.mxu0 0
    %358 = vmatpush1.bf16.msra.mxu0 0
    %359 = vmatprep.subr.bf16.mxu0 0
    %360 = vmatpush1.bf16.msra.mxu0 0
    %361 = vmatprep.subr.bf16.mxu0 0
    %362 = vmatpush1.bf16.msra.mxu0 0
    %363 = vmatprep.subr.bf16.mxu0 0
    %364 = vmatpush1.bf16.msra.mxu0 0
    %365 = vmatprep.subr.bf16.mxu0 0
    %366 = vmatpush1.bf16.msra.mxu0 0
    %367 = vmatprep.subr.bf16.mxu0 0
    %368 = vmatpush1.bf16.msra.mxu0 0
    %369 = vmatprep.subr.bf16.mxu0 0
    %370 = vmatpush1.bf16.msra.mxu0 0
    %371 = vmatprep.subr.bf16.mxu0 0
    %372 = vmatpush1.bf16.msra.mxu0 0
    %373 = vmatprep.subr.bf16.mxu0 0
    %374 = vmatpush1.bf16.msra.mxu0 0
    %375 = vmatprep.subr.bf16.mxu0 0
    %376 = vmatpush1.bf16.msra.mxu0 0
    %377 = vmatprep.subr.bf16.mxu0 0
    %378 = vmatpush1.bf16.msra.mxu0 0
    %379 = vmatprep.subr.bf16.mxu0 0
    %380 = vmatpush1.bf16.msra.mxu0 0
    %381 = vmatprep.mubr.bf16.mxu0 0
    %382 = vmatmul.mubr.bf16.gmra.mrb[0].mxu0 %v347
    %v383 = vpop.f32.mrb[0].mxu0
    %v384 = vadd.f32 %v333, %v383
    %v385 = vpop.f32.mrb[0].mxu0
    %v386 = vpop.f32.mrb[0].mxu0
    %v387 = vpop.f32.mrb[0].mxu0
    %388 = vdwg.mxu0
    %v389 = vmax.f32 %v384, 0.0
    %v390 = vpack.c.bf16 %v389, %v389
    %s391 = scalar_lea.vmem [#allocation5], 32
    %v392 = vld [vmem:[%s391] sm:$0xf]
    %v393 = vld [vmem:[%s391 + $0x4] sm:$0xf]
    %v394 = vld [vmem:[%s391 + $0x8] sm:$0xf]
    %v395 = vld [vmem:[%s391 + $0xc] sm:$0xf]
    %v396 = vld [vmem:[%s2 + $0x5] sm:$0x1]
    %v397 = vlaneseq
    %v398 = vshrl.u32 %v397, 7
    %v399 = vsub.s32 0, %v398
    %v400 = vrot.slane %v396, %v399
    %v405 = vunpack.c.l.b16 %v392
    %v406 = vunpack.c.l.b16 %v393
    %v407 = vunpack.c.l.b16 %v394
    %v408 = vunpack.c.l.b16 %v395
    %v409 = vpack.c.b16 %v406, %v405
    %v410 = vpack.c.b16 %v408, %v407
    %v414 = vsel %vm76, %v390, 0
    %416 = vmatprep.subr.bf16.mxu0 0
    %417 = vmatpush1.bf16.msra.mxu0 %v409
    %418 = vmatprep.subr.bf16.mxu0 0
    %419 = vmatpush1.bf16.msra.mxu0 %v410
    %420 = vmatprep.subr.bf16.mxu0 0
    %421 = vmatpush1.bf16.msra.mxu0 0
    %422 = vmatprep.subr.bf16.mxu0 0
    %423 = vmatpush1.bf16.msra.mxu0 0
    %424 = vmatprep.subr.bf16.mxu0 0
    %425 = vmatpush1.bf16.msra.mxu0 0
    %426 = vmatprep.subr.bf16.mxu0 0
    %427 = vmatpush1.bf16.msra.mxu0 0
    %428 = vmatprep.subr.bf16.mxu0 0
    %429 = vmatpush1.bf16.msra.mxu0 0
    %430 = vmatprep.subr.bf16.mxu0 0
    %431 = vmatpush1.bf16.msra.mxu0 0
    %432 = vmatprep.subr.bf16.mxu0 0
    %433 = vmatpush1.bf16.msra.mxu0 0
    %434 = vmatprep.subr.bf16.mxu0 0
    %435 = vmatpush1.bf16.msra.mxu0 0
    %436 = vmatprep.subr.bf16.mxu0 0
    %437 = vmatpush1.bf16.msra.mxu0 0
    %438 = vmatprep.subr.bf16.mxu0 0
    %439 = vmatpush1.bf16.msra.mxu0 0
    %440 = vmatprep.subr.bf16.mxu0 0
    %441 = vmatpush1.bf16.msra.mxu0 0
    %442 = vmatprep.subr.bf16.mxu0 0
    %443 = vmatpush1.bf16.msra.mxu0 0
    %444 = vmatprep.subr.bf16.mxu0 0
    %445 = vmatpush1.bf16.msra.mxu0 0
    %446 = vmatprep.subr.bf16.mxu0 0
    %447 = vmatpush1.bf16.msra.mxu0 0
    %448 = vmatprep.mubr.bf16.mxu0 0
    %449 = vmatmul.mubr.bf16.gmra.mrb[0].mxu0 %v414
    %v450 = vpop.f32.mrb[0].mxu0
    %v451 = vadd.f32 %v400, %v450
    %v452 = vpop.f32.mrb[0].mxu0
    %v453 = vpop.f32.mrb[0].mxu0
    %v454 = vpop.f32.mrb[0].mxu0
    %455 = vdwg.mxu0
    %v456 = vmax.f32 %v451, 0.0
    %v457 = vadd.f32 %v456, %v322
    %v458 = vpack.c.bf16 %v457, %v457
    %v459 = vld [vmem:[%s4] sm:$0xf]
    %v460 = vld [vmem:[%s4 + $0x4] sm:$0xf]
    %v461 = vld [vmem:[%s4 + $0x8] sm:$0xf]
    %v462 = vld [vmem:[%s4 + $0xc] sm:$0xf]
    %v463 = vld [vmem:[%s5] sm:$0x1]
    %v465 = vlaneseq
    %v466 = vshrl.u32 %v465, 7
    %v467 = vsub.s32 0, %v466
    %v468 = vrot.slane %v463, %v467
    %v474 = vunpack.c.l.b16 %v459
    %v475 = vunpack.c.l.b16 %v460
    %v476 = vunpack.c.l.b16 %v461
    %v477 = vunpack.c.l.b16 %v462
    %v478 = vpack.c.b16 %v475, %v474
    %v479 = vpack.c.b16 %v477, %v476
    %v483 = vsel %vm76, %v458, 0
    %485 = vmatprep.subr.bf16.mxu0 0
    %486 = vmatpush1.bf16.msra.mxu0 %v478
    %487 = vmatprep.subr.bf16.mxu0 0
    %488 = vmatpush1.bf16.msra.mxu0 %v479
    %489 = vmatprep.subr.bf16.mxu0 0
    %490 = vmatpush1.bf16.msra.mxu0 0
    %491 = vmatprep.subr.bf16.mxu0 0
    %492 = vmatpush1.bf16.msra.mxu0 0
    %493 = vmatprep.subr.bf16.mxu0 0
    %494 = vmatpush1.bf16.msra.mxu0 0
    %495 = vmatprep.subr.bf16.mxu0 0
    %496 = vmatpush1.bf16.msra.mxu0 0
    %497 = vmatprep.subr.bf16.mxu0 0
    %498 = vmatpush1.bf16.msra.mxu0 0
    %499 = vmatprep.subr.bf16.mxu0 0
    %500 = vmatpush1.bf16.msra.mxu0 0
    %501 = vmatprep.subr.bf16.mxu0 0
    %502 = vmatpush1.bf16.msra.mxu0 0
    %503 = vmatprep.subr.bf16.mxu0 0
    %504 = vmatpush1.bf16.msra.mxu0 0
    %505 = vmatprep.subr.bf16.mxu0 0
    %506 = vmatpush1.bf16.msra.mxu0 0
    %507 = vmatprep.subr.bf16.mxu0 0
    %508 = vmatpush1.bf16.msra.mxu0 0
    %509 = vmatprep.subr.bf16.mxu0 0
    %510 = vmatpush1.bf16.msra.mxu0 0
    %511 = vmatprep.subr.bf16.mxu0 0
    %512 = vmatpush1.bf16.msra.mxu0 0
    %513 = vmatprep.subr.bf16.mxu0 0
    %514 = vmatpush1.bf16.msra.mxu0 0
    %515 = vmatprep.subr.bf16.mxu0 0
    %516 = vmatpush1.bf16.msra.mxu0 0
    %517 = vmatprep.mubr.bf16.mxu0 0
    %518 = vmatmul.mubr.bf16.gmra.mrb[0].mxu0 %v483
    %v519 = vpop.f32.mrb[0].mxu0
    %v520 = vadd.f32 %v468, %v519
    %v521 = vpop.f32.mrb[0].mxu0
    %v522 = vpop.f32.mrb[0].mxu0
    %v523 = vpop.f32.mrb[0].mxu0
    %524 = vdwg.mxu0
    %vm525 = vcmask 130048
    %526 = vst.msk [vmem:[#allocation7] sm:$0xff] %vm525, %v520
    // Predicated region
    $region34: #{mlp_block_forward.1} parent=1 // pred_check
      _
    $region35: #{mlp_block_forward.1} parent=1 // pred_check_branch
      %528 = sbr.rel (0) target = $region37
    $region36: #{mlp_block_forward.1} parent=1 // pred_region
      %s530 = ssub.s32 128, 128
      %531 = vsyncadd [#allocation4], %s530
      %s533 = sshll.u32 [#allocation7], 4
      %s534 = int_to_ptr.vmem [resolvable:$true] %s533
      %536 = dma.vmem_to_hbm [thread:$0]  %s534, 128, %s6, [#allocation4]
    $region37: #{mlp_block_forward.1} parent=1 // pred_fallthru
      _
    // Predicated region
    $region38: #{mlp_block_forward.1} parent=1 // pred_check
      _
    $region39: #{mlp_block_forward.1} parent=1 // pred_check_branch
      %538 = sbr.rel (0) target = $region41
    $region40: #{mlp_block_forward.1} parent=1 // pred_region
      %539 = dma.done [#allocation4], 128
    $region41: #{mlp_block_forward.1} parent=1 // pred_fallthru
      _
    %540 = vsyncpa [#allocation3], 1
    %541 = vsyncpa [#allocation6], 1
    %542 = vsyncpa [#allocation4], 1

</llo_original>
